<compile_context>
chip_gen: v7x
topology: tpu7x:2x2x1
jax: 0.10.0
libtpu: 0.0.40
codegen_flags: <defaults>
</compile_context>

<pallas_src>
import numpy as np
import jax
import jax.numpy as jnp
from jax import lax
from jax.experimental import pallas as pl
from jax.experimental.pallas import tpu as pltpu

# padding index used by the (undefined-in-snippet) global
# `positional_id_padding_index`; we take the conventional value 0.
POSITIONAL_ID_PADDING_INDEX = 0

# Vocabularies up to this size use the one-hot MXU gather; larger tables use
# the direct SMEM-indexed row gather.
_ONE_HOT_MAX_VOCAB = 512


def _vmem_caps():
    """(physical, usable) VMEM bytes for the current TPU generation."""
    phys = 64 << 20  # conservative fallback (v7x per-TC physical VMEM)
    try:
        info = pltpu.get_tpu_info()
        phys = int(getattr(info, "vmem_capacity_bytes", phys)) or phys
    except Exception:
        pass
    # Leave headroom for Mosaic-internal scratch / semaphores:
    # 128 MiB (v5e/v6e) -> ~112 MiB usable, 64 MiB (v7x) -> ~56 MiB usable.
    usable = phys - max(phys // 8, 8 << 20)
    return phys, usable


def _pick_seq_tile(S, tile_d, itemsize, pack, max_tile_bytes, prefer_split):
    """Largest seq tile that divides S, is sublane-pack aligned, and fits the
    per-buffer budget. Never exceeds the budget by clamping a limit — if
    nothing fits, the smallest divisor is returned (structural shrink)."""
    divisors = [c for c in (1024, 512, 256, 128, 64, 32, 16, 8)
                if c <= S and S % c == 0]

    def fits(c):
        return c * tile_d * itemsize <= max_tile_bytes

    for c in divisors:  # pack-aligned, fits, leaves >= 2 tiles (v7x 2 TCs)
        if c % pack == 0 and fits(c) and (not prefer_split or S // c >= 2):
            return c
    for c in divisors:  # drop the split preference
        if c % pack == 0 and fits(c):
            return c
    for c in divisors:  # drop pack alignment (masked stores, still correct)
        if fits(c):
            return c
    if divisors:
        return divisors[-1]  # nothing fits the budget: smallest divisor
    return S  # tiny / ragged sequence: one full tile


def _onehot_add_kernel(ids_ref, x_ref, emb_ref, o_ref):
    """Small-vocab path: gather = one-hot MXU matmul.

    ids_ref: (1, tS, 1) int32 VMEM
    x_ref:   (1, tS, tD) VMEM
    emb_ref: (V, tD) VMEM (resident whole table or a D-slice)
    o_ref:   (1, tS, tD) VMEM
    """
    vocab = emb_ref.shape[0]
    ids = ids_ref[0]                                           # (tS, 1)
    pos_iota = lax.broadcasted_iota(jnp.int32, (ids.shape[0], vocab), 1)
    # Out-of-range ids match no column -> zero row (nn.Embedding would raise).
    one_hot = (pos_iota == ids).astype(emb_ref.dtype)          # (tS, V)
    pos = jnp.dot(one_hot, emb_ref[...], preferred_element_type=jnp.float32)
    o_ref[0] = (x_ref[0].astype(jnp.float32) + pos).astype(o_ref.dtype)


def _make_gather_add_kernel(rows_per_iter):
    """Large-vocab path: direct SMEM-indexed row gather from the VMEM table.

    ids_ref: (1, tS) int32 SMEM
    x_ref:   (1, tS, tD) VMEM
    emb_ref: (V, tD) VMEM
    o_ref:   (1, tS, tD) VMEM
    """
    # TODO(synk): if profiling shows vld/XLU saturation on v7x with huge V,
    # move the row gather onto the DMA engine (per-row async VMEM copies into
    # a double-buffered (2, rows_per_iter, tD) scratch).
    def kernel(ids_ref, x_ref, emb_ref, o_ref):
        vocab = emb_ref.shape[0]
        tile_s = x_ref.shape[1]
        n_blocks = tile_s // rows_per_iter

        def body(r, carry):
            s0 = pl.multiple_of(r * rows_per_iter, rows_per_iter)
            rows = []
            for j in range(rows_per_iter):
                # Clamp: VMEM has no OOB check (nn.Embedding raises instead).
                idx = jnp.clip(ids_ref[0, s0 + j], 0, vocab - 1)
                rows.append(emb_ref[pl.ds(idx, 1), :])
            pos = rows[0] if rows_per_iter == 1 else jnp.concatenate(rows, axis=0)
            xs = x_ref[0, pl.ds(s0, rows_per_iter), :]
            o_ref[0, pl.ds(s0, rows_per_iter), :] = (
                xs.astype(jnp.float32) + pos.astype(jnp.float32)
            ).astype(o_ref.dtype)
            return carry

        # Unrolled so block i+1's SMEM id reads / row loads overlap block i's
        # store (a visible non-unrolled loop measured ~35% slower).
        lax.fori_loop(0, n_blocks, body, 0, unroll=min(n_blocks, 8))

    return kernel


def custom_positional_encoding(x, positional_ids, embedding_table):
    """x: (B, S, D), positional_ids: (B, S) int, embedding_table: (V, D).
    Returns (B, S, D) = x + embedding_table[positional_ids]."""
    B, S, D = x.shape
    V, De = embedding_table.shape
    assert De == D, "embedding dim mismatch"

    out_dtype = jnp.promote_types(x.dtype, embedding_table.dtype)
    x_bytes = jnp.dtype(x.dtype).itemsize
    out_bytes = jnp.dtype(out_dtype).itemsize
    emb_bytes = jnp.dtype(embedding_table.dtype).itemsize
    io_bytes = max(x_bytes, out_bytes)

    _, usable_vmem = _vmem_caps()
    slack = 2 << 20
    table_bytes = V * D * emb_bytes

    # ---- model-dim tiling (big tables, mainly v7x's 64 MiB VMEM) ------------
    table_budget = int(usable_vmem * 0.4)
    if table_bytes <= table_budget or D % 128 != 0:
        # Whole table resident as an un-blocked VMEM operand: DMA'd once,
        # single buffer (no pointless double-buffering of a constant block).
        # TODO(synk): for huge tables whose D is not a multiple of 128, keep
        # the table in pl.ANY and DMA only the gathered rows.
        tile_d, n_d, table_resident = D, 1, True
        table_foot = table_bytes
    else:
        # Resident (V, tile_d) slice; d is the slowest grid axis so each slice
        # is fetched exactly once (default double-buffering of the small slice
        # is already accounted for in the budget).
        per_col = V * emb_bytes
        tile_d = max(128, (table_budget // (2 * per_col)) // 128 * 128)
        while D % tile_d:
            tile_d -= 128
        tile_d = max(tile_d, 128)
        n_d = D // tile_d
        table_resident = False
        table_foot = 2 * V * tile_d * emb_bytes

    # ---- seq tiling: full-sublane blocks, ~2 MiB cap, 4 pipeline buffers ----
    pack = max(8, 32 // x_bytes)  # sublane packing: 8 f32 / 16 bf16 / 32 i8
    max_tile_bytes = min(2 << 20,
                         max((usable_vmem - table_foot - slack) // 4, 64 << 10))
    prefer_split = (B == 1)  # keep >= 2 parallel steps so both v7x TCs get work
    tile_s = _pick_seq_tile(S, tile_d, io_bytes, pack, max_tile_bytes, prefer_split)
    n_s = S // tile_s

    use_onehot = V <= _ONE_HOT_MAX_VOCAB

    # ---- specs ---------------------------------------------------------------
    ids32 = positional_ids.astype(jnp.int32)
    x_spec = pl.BlockSpec((1, tile_s, tile_d), lambda d, b, t: (b, t, d))
    out_spec = pl.BlockSpec((1, tile_s, tile_d), lambda d, b, t: (b, t, d))

    if table_resident:
        emb_spec = pl.BlockSpec(memory_space=pltpu.MemorySpace.VMEM)
    else:
        emb_spec = pl.BlockSpec((V, tile_d), lambda d, b, t: (0, d))

    if use_onehot:
        # ids as a (1, tile_s, 1) VMEM column -> the (tile_s, V) one-hot is a
        # pure lane-broadcast compare; the gather rides the otherwise-idle MXU.
        ids_in = ids32.reshape(B, S, 1)
        ids_spec = pl.BlockSpec((1, tile_s, 1), lambda d, b, t: (b, t, 0))
        kernel = _onehot_add_kernel
        ids_foot = 2 * tile_s * 4
    else:
        # Per-tile SMEM ids (no whole-(B, S) scalar prefetch): scales to long
        # sequences / big batches and pipelines like any other input.
        ids_in = ids32
        ids_spec = pl.BlockSpec((1, tile_s), lambda d, b, t: (b, t),
                                memory_space=pltpu.MemorySpace.SMEM)
        rows_per_iter = pack if tile_s % pack == 0 else (8 if tile_s % 8 == 0 else 1)
        kernel = _make_gather_add_kernel(rows_per_iter)
        ids_foot = 0

    grid_spec = pl.GridSpec(
        grid=(n_d, B, n_s),  # d slowest -> each table slice is fetched once
        in_specs=[ids_spec, x_spec, emb_spec],
        out_specs=out_spec,
    )

    # ---- compiler params: generation-aware ceiling, never below footprint ----
    tile_foot = 2 * tile_s * tile_d * (x_bytes + out_bytes)  # 2 in + 2 out bufs
    footprint = tile_foot + table_foot + ids_foot + slack
    compiler_kwargs = dict(dimension_semantics=("arbitrary", "parallel", "parallel"))
    if footprint > (16 << 20):  # v5e's scoped-VMEM default is only 16 MiB
        compiler_kwargs["vmem_limit_bytes"] = int(max(usable_vmem, footprint))

    cost = pl.CostEstimate(
        flops=B * S * D + (2 * B * S * V * D if use_onehot else 0),
        transcendentals=0,
        bytes_accessed=B * S * D * (x_bytes + out_bytes) + B * S * 4 + table_bytes,
    )

    return pl.pallas_call(
        kernel,
        out_shape=jax.ShapeDtypeStruct((B, S, D), out_dtype),
        grid_spec=grid_spec,
        compiler_params=pltpu.CompilerParams(**compiler_kwargs),
        cost_estimate=cost,
    )(ids_in, x, embedding_table)


def make_embedding_table(key, max_seq_len, model_dim, padding_idx):
    """Deterministic init matching nn.Embedding: N(0,1) rows, padding row zeroed."""
    table = jax.random.normal(key, (max_seq_len + 1, model_dim), dtype=jnp.float32)
    table = table.at[padding_idx].set(0.0)
    return table


if __name__ == "__main__":
    # Small shapes consistent with the module's forward.
    batch = 2
    seq_len = 8
    model_dim = 32
    max_seq_len = 16
    vocab = max_seq_len + 1

    key = jax.random.PRNGKey(0)
    kx, kids, kemb = jax.random.split(key, 3)

    x = jax.random.normal(kx, (batch, seq_len, model_dim), dtype=jnp.float32)
    positional_ids = jax.random.randint(
        kids, (batch, seq_len), 0, vocab, dtype=jnp.int32
    )
    # make sure the padding index shows up at least once
    positional_ids = positional_ids.at[0, 0].set(POSITIONAL_ID_PADDING_INDEX)

    emb_table = make_embedding_table(
        kemb, max_seq_len, model_dim, POSITIONAL_ID_PADDING_INDEX
    )

    out = jax.block_until_ready(
        custom_positional_encoding(x, positional_ids, emb_table)
    )

    # Pure-JAX reference (same semantics as torch: x + embedding(ids)).
    ref = x + emb_table[positional_ids]
    np.testing.assert_allclose(np.asarray(out), np.asarray(ref), rtol=1e-6, atol=1e-6)

    print("KERNEL_OK")
</pallas_src>

<mosaic_0001>
module attributes {stable_mosaic.version = 11 : i64} {
  func.func @_onehot_add_kernel(%arg0: i32, %arg1: i32, %arg2: i32, %arg3: memref<1x8x1xi32, #tpu.memory_space<vmem>>, %arg4: memref<1x8x32xf32, #tpu.memory_space<vmem>>, %arg5: memref<17x32xf32, #tpu.memory_space<vmem>>, %arg6: memref<1x8x32xf32, #tpu.memory_space<vmem>>) attributes {dimension_semantics = [#tpu.dimension_semantics<arbitrary>, #tpu.dimension_semantics<parallel>, #tpu.dimension_semantics<parallel>], iteration_bounds = array<i64: 1, 2, 1>, scalar_prefetch = 0 : i64, scratch_operands = 0 : i64, tpu.core_type = #tpu.core_type<tc>, window_params = [{transform_indices = @transform_0, window_bounds = array<i64: 1, 8, 1>}, {transform_indices = @transform_1, window_bounds = array<i64: 1, 8, 32>}, {pipeline_mode = #tpu.pipeline_mode<synchronous>, transform_indices = @transform_2, window_bounds = array<i64: 17, 32>}, {transform_indices = @transform_3, window_bounds = array<i64: 1, 8, 32>}]} {
    %c0 = arith.constant 0 : index
    %c0_0 = arith.constant 0 : index
    %c0_1 = arith.constant 0 : index
    %0 = vector.load %arg3[%c0, %c0_0, %c0_1] : memref<1x8x1xi32, #tpu.memory_space<vmem>>, vector<1x8x1xi32>
    %1 = vector.shape_cast %0 : vector<1x8x1xi32> to vector<8x1xi32>
    %2 = tpu.iota {dimensions = array<i32: 1>} : vector<8x17xi32>
    %3 = vector.broadcast %1 : vector<8x1xi32> to vector<8x17xi32>
    %4 = arith.cmpi eq, %2, %3 : vector<8x17xi32>
    %5 = arith.extui %4 : vector<8x17xi1> to vector<8x17xi32>
    %6 = arith.sitofp %5 : vector<8x17xi32> to vector<8x17xf32>
    %c0_2 = arith.constant 0 : index
    %c0_3 = arith.constant 0 : index
    %7 = vector.load %arg5[%c0_2, %c0_3] : memref<17x32xf32, #tpu.memory_space<vmem>>, vector<17x32xf32>
    %cst = arith.constant dense<0.000000e+00> : vector<8x32xf32>
    %8 = tpu.matmul %6, %7, %cst {dimension_numbers = #tpu.dot_dimension_numbers<[1], [0], [0], [1], [0, 0, 1, 1], [], []>} : vector<8x17xf32>, vector<17x32xf32>, vector<8x32xf32> -> vector<8x32xf32>
    %c0_4 = arith.constant 0 : index
    %c0_5 = arith.constant 0 : index
    %c0_6 = arith.constant 0 : index
    %9 = vector.load %arg4[%c0_4, %c0_5, %c0_6] : memref<1x8x32xf32, #tpu.memory_space<vmem>>, vector<1x8x32xf32>
    %10 = vector.shape_cast %9 : vector<1x8x32xf32> to vector<8x32xf32>
    %11 = arith.addf %10, %8 : vector<8x32xf32>
    %c0_7 = arith.constant 0 : index
    %c0_8 = arith.constant 0 : index
    %c0_9 = arith.constant 0 : index
    %12 = vector.load %arg6[%c0_7, %c0_8, %c0_9] : memref<1x8x32xf32, #tpu.memory_space<vmem>>, vector<1x8x32xf32>
    %13 = vector.shape_cast %12 : vector<1x8x32xf32> to vector<8x32xf32>
    %14 = vector.shape_cast %11 : vector<8x32xf32> to vector<1x8x32xf32>
    tpu.vector_store %arg6[%c0_7, %c0_8, %c0_9], %14 {strides = array<i32>} : memref<1x8x32xf32, #tpu.memory_space<vmem>>, vector<1x8x32xf32>,
    return
  }
  func.func @transform_0(%arg0: i32, %arg1: i32, %arg2: i32) -> (i32, i32, i32) {
    %c0_i32 = arith.constant 0 : i32
    %c0_i32_0 = arith.constant 0 : i32
    return %arg1, %arg2, %c0_i32 : i32, i32, i32
  }
  func.func @transform_1(%arg0: i32, %arg1: i32, %arg2: i32) -> (i32, i32, i32) {
    %c0_i32 = arith.constant 0 : i32
    return %arg1, %arg2, %arg0 : i32, i32, i32
  }
  func.func @transform_2(%arg0: i32, %arg1: i32, %arg2: i32) -> (i32, i32) {
    %c0_i32 = arith.constant 0 : i32
    %c0_i32_0 = arith.constant 0 : i32
    %c0_i32_1 = arith.constant 0 : i32
    return %c0_i32, %c0_i32_0 : i32, i32
  }
  func.func @transform_3(%arg0: i32, %arg1: i32, %arg2: i32) -> (i32, i32, i32) {
    %c0_i32 = arith.constant 0 : i32
    return %arg1, %arg2, %arg0 : i32, i32, i32
  }
}

</mosaic_0001>

<llo_original>
// kernel: tpu_custom_call.1
$region0: #{tpu_custom_call.1}
  #allocation0 [shape = 'u32[]', space=smem, size = 0x4, offset = 0x4, fixed_abs, tag = 'smem constant byte address 0x4 - core index']
  #allocation1 [shape = 'u32[144,128]{1,0:T(1,128)}', space=vmem, size = 0x12000, scoped, tag = 'internal scratch']
  %s0 = inlined_call_operand.vmem [shape: s32[2,8,1], index: 0, kind: input, shape index: {}]
  %s1 = inlined_call_operand.hbm [shape: f32[2,8,32], index: 1, kind: input, shape index: {}]
  %s2 = inlined_call_operand.vmem [shape: f32[17,32], index: 2, kind: input, shape index: {}]
  %s3 = inlined_call_operand.hbm [shape: f32[2,8,32], index: 3, kind: output, shape index: {}]
  %s4 = sld [smem:[#allocation0]]
  $region49: #{tpu_custom_call.1} parent=0
    _
  %s6 = ssub.s32 1, %s4
  %s7 = scalar_select 0, %s6, %s4
  $region1: #{tpu_custom_call.1} parent=0
    #allocation2 [shape = 'u8[8192]{0}', space=vmem, size = 0x2000, scoped, tag = 'input window, operand 1']
    #allocation3 [shape = 's32[2]{0}', space=sflag, size = 0x8, scoped, tag = 'scoped memory for tpu_custom_call.1']
    #allocation4 [shape = 's32[2]{0}', space=sflag, size = 0x8, scoped, tag = 'scoped memory for tpu_custom_call.1']
    #allocation5 [shape = 'u8[8192]{0}', space=vmem, size = 0x2000, scoped, tag = 'output window, operand 0']
    %8 = vsyncpa [#allocation3], 0
    %s9 = scalar_lea.sflag [#allocation3], 1
    %10 = vsyncpa %s9, 0
    %11 = vsyncpa [#allocation4], 0
    %s12 = scalar_lea.sflag [#allocation4], 1
    %13 = vsyncpa %s12, 0
    loop: start=0, step=1, limit=4
    $region2: #{tpu_custom_call.1} parent=1 // loop_pre_header
      _
    $region3: #{tpu_custom_call.1} parent=1 // loop_header
      %s15 = sphi 0, %s19
      %p16 = scmp.ge.s32.totalorder %s15, 4
      %s22 = sphi 0, %s41
      %s23 = sphi 0, %s37
      %s24 = sphi 0, %s33
      %s25 = sphi 0, %s22
      %s26 = sphi 0, %s23
      %s27 = sphi 0, %s24
      %s28 = sphi 0, %s25
      %s29 = sphi 0, %s26
      %s30 = sphi 0, %s27
      %s46 = sphi 0, %s48
      %s49 = sphi 0, %s46
      %s50 = sphi 0, %s49
      %s66 = sphi 0, %s50
      %s76 = sphi 0, %s78
      %s79 = sphi 0, %s76
      %s80 = sphi 0, %s79
      %s96 = sphi 0, %s80
      %s100 = sphi 0, %s100
      %s102 = sphi 0, %s100
      %s103 = sphi 0, %s102
      %s117 = sphi 0, %s103
      %s127 = sphi 0, %s129
      %s130 = sphi 0, %s127
      %s131 = sphi 0, %s130
      %s147 = sphi 0, %s131
    $region4: #{tpu_custom_call.1} parent=1 // loop_header_branch
      %18 = sbr.rel (%p16) target = $region8
    $region5: #{tpu_custom_call.1} parent=1 // loop_body
      %s20 = ssub.s32 %s15, 1
      %s21 = ssub.s32 %s15, 2
      %s31 = sadd.s32 1, %s24
      %p32 = scmp.ge.s32.totalorder %s31, 1
      %s33 = scalar_select %p32, 0, %s31
      %s34 = sadd.s32 1, %s23
      %s35 = scalar_select %p32, %s34, %s23
      %p36 = scmp.ge.s32.totalorder %s35, 2
      %s37 = scalar_select %p36, 0, %s35
      %s38 = sadd.s32 1, %s22
      %s39 = scalar_select %p36, %s38, %s22
      %p40 = scmp.ge.s32.totalorder %s39, 1
      %s41 = scalar_select %p40, 0, %s39
      %s42 = ssub.s32 %s23, %s37
      %s43 = ssub.s32 %s24, %s33
      %s44 = sor.u32 %s42, %s43
      %p45 = scmp.eq.s32.totalorder %s44, 0
      %s47 = sadd.s32 %s46, 1
      %s48 = scalar_select %p45, %s46, %s47
      %p51 = pneg %p45
      %p52 = scmp.eq.s32.totalorder %s15, 1
      %p53 = por %p51, %p52
      %p54 = scmp.ne.s32.totalorder %s46, %s49
      %p55 = scmp.eq.s32.totalorder %s15, 0
      %p56 = por %p54, %p55
      %p57 = scmp.ne.s32.totalorder %s46, %s49
      %p58 = scmp.eq.s32.totalorder %s20, 1
      %p59 = por %p57, %p58
      %p60 = scmp.ne.s32.totalorder %s49, %s50
      %p61 = scmp.eq.s32.totalorder %s20, 0
      %p62 = por %p60, %p61
      %p63 = scmp.ne.s32.totalorder %s49, %s50
      %p64 = scmp.eq.s32.totalorder %s21, 1
      %p65 = por %p63, %p64
      %p67 = scmp.ne.s32.totalorder %s50, %s66
      %p68 = scmp.eq.s32.totalorder %s21, 0
      %p69 = por %p67, %p68
      %s70 = ssub.s32 %s23, %s37
      %s71 = ssub.s32 %s24, %s33
      %s72 = sor.u32 %s70, %s71
      %s73 = ssub.s32 %s22, %s41
      %s74 = sor.u32 %s72, %s73
      %p75 = scmp.eq.s32.totalorder %s74, 0
      %s77 = sadd.s32 %s76, 1
      %s78 = scalar_select %p75, %s76, %s77
      %p81 = pneg %p75
      %p82 = scmp.eq.s32.totalorder %s15, 1
      %p83 = por %p81, %p82
      %p84 = scmp.ne.s32.totalorder %s76, %s79
      %p85 = scmp.eq.s32.totalorder %s15, 0
      %p86 = por %p84, %p85
      %p87 = scmp.ne.s32.totalorder %s76, %s79
      %p88 = scmp.eq.s32.totalorder %s20, 1
      %p89 = por %p87, %p88
      %p90 = scmp.ne.s32.totalorder %s79, %s80
      %p91 = scmp.eq.s32.totalorder %s20, 0
      %p92 = por %p90, %p91
      %p93 = scmp.ne.s32.totalorder %s79, %s80
      %p94 = scmp.eq.s32.totalorder %s21, 1
      %p95 = por %p93, %p94
      %p97 = scmp.ne.s32.totalorder %s80, %s96
      %p98 = scmp.eq.s32.totalorder %s21, 0
      %p99 = por %p97, %p98
      %s101 = sadd.s32 %s100, 1
      %p104 = scmp.eq.s32.totalorder %s15, 1
      %p105 = scmp.ne.s32.totalorder %s100, %s102
      %p106 = scmp.eq.s32.totalorder %s15, 0
      %p107 = por %p105, %p106
      %p108 = scmp.ne.s32.totalorder %s100, %s102
      %p109 = scmp.eq.s32.totalorder %s20, 1
      %p110 = por %p108, %p109
      %p111 = scmp.ne.s32.totalorder %s102, %s103
      %p112 = scmp.eq.s32.totalorder %s20, 0
      %p113 = por %p111, %p112
      %p114 = scmp.ne.s32.totalorder %s102, %s103
      %p115 = scmp.eq.s32.totalorder %s21, 1
      %p116 = por %p114, %p115
      %p118 = scmp.ne.s32.totalorder %s103, %s117
      %p119 = scmp.eq.s32.totalorder %s21, 0
      %p120 = por %p118, %p119
      %s121 = ssub.s32 %s23, %s37
      %s122 = ssub.s32 %s24, %s33
      %s123 = sor.u32 %s121, %s122
      %s124 = ssub.s32 %s22, %s41
      %s125 = sor.u32 %s123, %s124
      %p126 = scmp.eq.s32.totalorder %s125, 0
      %s128 = sadd.s32 %s127, 1
      %s129 = scalar_select %p126, %s127, %s128
      %p132 = pneg %p126
      %p133 = scmp.eq.s32.totalorder %s15, 1
      %p134 = por %p132, %p133
      %p135 = scmp.ne.s32.totalorder %s127, %s130
      %p136 = scmp.eq.s32.totalorder %s15, 0
      %p137 = por %p135, %p136
      %p138 = scmp.ne.s32.totalorder %s127, %s130
      %p139 = scmp.eq.s32.totalorder %s20, 1
      %p140 = por %p138, %p139
      %p141 = scmp.ne.s32.totalorder %s130, %s131
      %p142 = scmp.eq.s32.totalorder %s20, 0
      %p143 = por %p141, %p142
      %p144 = scmp.ne.s32.totalorder %s130, %s131
      %p145 = scmp.eq.s32.totalorder %s21, 1
      %p146 = por %p144, %p145
      %p148 = scmp.ne.s32.totalorder %s131, %s147
      %p149 = scmp.eq.s32.totalorder %s21, 0
      %p150 = por %p148, %p149
      %p151 = scmp.le.s32.totalorder 1, %s15
      %p152 = scmp.lt.s32.totalorder %s15, 3
      %p153 = pnand %p151, %p152
      %p154 = pneg %p153
      // Predicated region
      $region9: #{tpu_custom_call.1} parent=5 // pred_check
        _
      $region10: #{tpu_custom_call.1} parent=5 // pred_check_branch
        %156 = sbr.rel (%p153) target = $region12
      $region11: #{tpu_custom_call.1} parent=5 // pred_region
        %s157 = ssub.s32 %s15, 1
        // Predicated region
        $region13: #{tpu_custom_call.1} parent=11 // pred_check
          %p158 = pneg %p113
        $region14: #{tpu_custom_call.1} parent=11 // pred_check_branch
          %160 = sbr.rel (%p158) target = $region16
        $region15: #{tpu_custom_call.1} parent=11 // pred_region
          _
        $region16: #{tpu_custom_call.1} parent=11 // pred_fallthru
          _
      $region12: #{tpu_custom_call.1} parent=5 // pred_fallthru
        _
      %p161 = scmp.lt.s32.totalorder %s15, 2
      // Predicated region
      $region17: #{tpu_custom_call.1} parent=5 // pred_check
        %p162 = pneg %p161
      $region18: #{tpu_custom_call.1} parent=5 // pred_check_branch
        %164 = sbr.rel (%p162) target = $region20
      $region19: #{tpu_custom_call.1} parent=5 // pred_region
        // Predicated region
        $region21: #{tpu_custom_call.1} parent=19 // pred_check
          %p165 = pneg %p56
        $region22: #{tpu_custom_call.1} parent=19 // pred_check_branch
          %167 = sbr.rel (%p165) target = $region24
        $region23: #{tpu_custom_call.1} parent=19 // pred_region
          %p168 = scmp.lt.s32.totalorder %s23, 1
          %s169 = scalar_select %p168, %s23, 1
          %p170 = scmp.lt.s32.totalorder %s24, 0
          %s171 = scalar_select %p170, %s24, 0
          %s172 = sadd.s32 %s171, %s169
          %s173 = smul.addr %s172, 8
          %s174 = scalar_lea.vmem %s0, %s173
        $region24: #{tpu_custom_call.1} parent=19 // pred_fallthru
          _
        // Predicated region
        $region25: #{tpu_custom_call.1} parent=19 // pred_check
          %p175 = pneg %p86
        $region26: #{tpu_custom_call.1} parent=19 // pred_check_branch
          %177 = sbr.rel (%p175) target = $region28
        $region27: #{tpu_custom_call.1} parent=19 // pred_region
          %s178 = sand.u32 %s76, 1
          %s179 = scalar_lea.sflag [#allocation3], %s178
          %s180 = sand.u32 %s76, 1
          %s181 = smul.addr %s180, 8
          %s182 = scalar_lea.vmem [#allocation2], %s181
          %s184 = ssub.s32 128, 128
          %185 = vsyncadd %s179, %s184
          %s186 = sadd.s32 %s22, %s24
          %s187 = sadd.s32 %s186, %s23
          %s188 = smul.addr %s187, 128
          %s189 = scalar_lea.hbm %s1, %s188
          %s191 = sshll.u32 %s182, 4
          %s192 = int_to_ptr.vmem [resolvable:$true] %s191
          %194 = dma.hbm_to_vmem [thread:$0]  %s189, 128, %s192, %s179
        $region28: #{tpu_custom_call.1} parent=19 // pred_fallthru
          _
      $region20: #{tpu_custom_call.1} parent=5 // pred_fallthru
        _
      %p195 = scmp.le.s32.totalorder 1, %s15
      %p196 = scmp.lt.s32.totalorder %s15, 3
      %p197 = pnand %p195, %p196
      %p198 = pneg %p197
      // Predicated region
      $region29: #{tpu_custom_call.1} parent=5 // pred_check
        _
      $region30: #{tpu_custom_call.1} parent=5 // pred_check_branch
        %200 = sbr.rel (%p197) target = $region32
      $region31: #{tpu_custom_call.1} parent=5 // pred_region
        %s201 = ssub.s32 %s15, 1
        %s202 = sand.u32 %s79, 1
        %s203 = scalar_lea.sflag [#allocation3], %s202
        %s204 = sand.u32 %s79, 1
        %s205 = smul.addr %s204, 8
        %s206 = scalar_lea.vmem [#allocation2], %s205
        // Predicated region
        $region33: #{tpu_custom_call.1} parent=31 // pred_check
          %p207 = pneg %p92
        $region34: #{tpu_custom_call.1} parent=31 // pred_check_branch
          %209 = sbr.rel (%p207) target = $region36
        $region35: #{tpu_custom_call.1} parent=31 // pred_region
          %210 = dma.done %s203, 128
        $region36: #{tpu_custom_call.1} parent=31 // pred_fallthru
          _
        %p211 = scmp.lt.s32.totalorder %s26, 1
        %s212 = scalar_select %p211, %s26, 1
        %p213 = scmp.lt.s32.totalorder %s27, 0
        %s214 = scalar_select %p213, %s27, 0
        %s215 = sadd.s32 %s214, %s212
        %s216 = smul.addr %s215, 8
        %s217 = scalar_lea.vmem %s0, %s216
        %p218 = pneg %p62
        %p219 = pneg %p59
        %s220 = sand.u32 %s79, 1
        %s221 = scalar_lea.sflag [#allocation3], %s220
        %s222 = sand.u32 %s79, 1
        %s223 = smul.addr %s222, 8
        %s224 = scalar_lea.vmem [#allocation2], %s223
        %p225 = pneg %p92
        %p226 = pneg %p89
        %p227 = pneg %p113
        %p228 = pneg %p110
        %p229 = pneg %p143
        %p230 = pneg %p140
        %s231 = sand.u32 %s130, 1
        %s232 = scalar_lea.sflag [#allocation4], %s231
        %s233 = sand.u32 %s130, 1
        %s234 = smul.addr %s233, 8
        %s235 = scalar_lea.vmem [#allocation5], %s234
        %p236 = scmp.lt.s32.totalorder %s26, 1
        %s237 = scalar_select %p236, %s26, 1
        %p238 = scmp.lt.s32.totalorder %s27, 0
        %s239 = scalar_select %p238, %s27, 0
        %s240 = sadd.s32 %s239, %s237
        %s241 = smul.addr %s240, 8
        %s242 = scalar_lea.vmem %s0, %s241
        %v243 = vld [vmem:[%s242] sm:$0xff]
        %v244 = vlaneseq
        %v245 = vand.u32 %v244, 127
        %246 = vset.pattern.permute.xlu0 0
        %247 = vperm.xlu0 %246, %v243
        %v248 = vpop.permute.xlu0 %247
        %vm249 = vcmp.eq.s32.totalorder %v245, %v248
        %v250 = vsel %vm249, 1, 0
        %v251 = vcvt.s32.f32 %v250
        %v252 = vld [vmem:[%s2] sm:$0xff]
        %v253 = vld [vmem:[%s2 + $0x8] sm:$0xff]
        %v254 = vld [vmem:[%s2 + $0x10] sm:$0x1]
        %vm255 = vcmask 138240
        %v257 = vsel %vm255, %v251, 0
        %vm259 = vcmask 1040384
        %v261 = vsel %vm259, %v254, 0
        %263 = vmatprep.subr.mxu0 0.0
        %264 = vmatpush1.msra.mxu0 %v252
        %265 = vmatprep.subr.mxu0 0.0
        %266 = vmatpush1.msra.mxu0 %v253
        %267 = vmatprep.subr.mxu0 0.0
        %268 = vmatpush1.msra.mxu0 %v261
        %269 = vmatprep.subr.mxu0 0.0
        %270 = vmatpush1.msra.mxu0 0.0
        %271 = vmatprep.subr.mxu0 0.0
        %272 = vmatpush1.msra.mxu0 0.0
        %273 = vmatprep.subr.mxu0 0.0
        %274 = vmatpush1.msra.mxu0 0.0
        %275 = vmatprep.subr.mxu0 0.0
        %276 = vmatpush1.msra.mxu0 0.0
        %277 = vmatprep.subr.mxu0 0.0
        %278 = vmatpush1.msra.mxu0 0.0
        %279 = vmatprep.subr.mxu0 0.0
        %280 = vmatpush1.msra.mxu0 0.0
        %281 = vmatprep.subr.mxu0 0.0
        %282 = vmatpush1.msra.mxu0 0.0
        %283 = vmatprep.subr.mxu0 0.0
        %284 = vmatpush1.msra.mxu0 0.0
        %285 = vmatprep.subr.mxu0 0.0
        %286 = vmatpush1.msra.mxu0 0.0
        %287 = vmatprep.subr.mxu0 0.0
        %288 = vmatpush1.msra.mxu0 0.0
        %289 = vmatprep.subr.mxu0 0.0
        %290 = vmatpush1.msra.mxu0 0.0
        %291 = vmatprep.subr.mxu0 0.0
        %292 = vmatpush1.msra.mxu0 0.0
        %293 = vmatprep.subr.mxu0 0.0
        %294 = vmatpush1.msra.mxu0 0.0
        %295 = vmatprep.subr.mxu0 0.0
        %296 = vmatpush1.msra.mxu0 0.0
        %297 = vmatprep.subr.mxu0 0.0
        %298 = vmatpush1.msra.mxu0 0.0
        %299 = vmatprep.subr.mxu0 0.0
        %300 = vmatpush1.msra.mxu0 0.0
        %301 = vmatprep.subr.mxu0 0.0
        %302 = vmatpush1.msra.mxu0 0.0
        %303 = vmatprep.subr.mxu0 0.0
        %304 = vmatpush1.msra.mxu0 0.0
        %305 = vmatprep.subr.mxu0 0.0
        %306 = vmatpush1.msra.mxu0 0.0
        %307 = vmatprep.subr.mxu0 0.0
        %308 = vmatpush1.msra.mxu0 0.0
        %309 = vmatprep.subr.mxu0 0.0
        %310 = vmatpush1.msra.mxu0 0.0
        %311 = vmatprep.subr.mxu0 0.0
        %312 = vmatpush1.msra.mxu0 0.0
        %313 = vmatprep.subr.mxu0 0.0
        %314 = vmatpush1.msra.mxu0 0.0
        %315 = vmatprep.subr.mxu0 0.0
        %316 = vmatpush1.msra.mxu0 0.0
        %317 = vmatprep.subr.mxu0 0.0
        %318 = vmatpush1.msra.mxu0 0.0
        %319 = vmatprep.subr.mxu0 0.0
        %320 = vmatpush1.msra.mxu0 0.0
        %321 = vmatprep.subr.mxu0 0.0
        %322 = vmatpush1.msra.mxu0 0.0
        %323 = vmatprep.subr.mxu0 0.0
        %324 = vmatpush1.msra.mxu0 0.0
        %325 = vmatprep.subr.mxu0 0.0
        %326 = vmatpush1.msra.mxu0 0.0
        %327 = vmatprep.mubr.f32.mxu0 0.0
        %328 = vmatmul.mubr.f32.gmra.mrb[0].mxu0 %v257
        %v329 = vpop.f32.mrb[0].mxu0
        %v330 = vadd.f32 0.0, %v329
        %v331 = vpop.f32.mrb[0].mxu0
        %332 = vdwg.mxu0
        %v333 = vld [vmem:[%s206] sm:$0xff]
        %v334 = vadd.f32 %v333, %v330
        %vm335 = vcmask 261120
        %336 = vst.msk [vmem:[%s235] sm:$0xff] %vm335, %v334
        %s337 = sand.u32 %s130, 1
        %s338 = scalar_lea.sflag [#allocation4], %s337
        %s339 = sand.u32 %s130, 1
        %s340 = smul.addr %s339, 8
        %s341 = scalar_lea.vmem [#allocation5], %s340
        // Predicated region
        $region37: #{tpu_custom_call.1} parent=31 // pred_check
          %p342 = pneg %p140
        $region38: #{tpu_custom_call.1} parent=31 // pred_check_branch
          %344 = sbr.rel (%p342) target = $region40
        $region39: #{tpu_custom_call.1} parent=31 // pred_region
          %s346 = ssub.s32 128, 128
          %347 = vsyncadd %s338, %s346
          %s348 = sadd.s32 %s25, %s27
          %s349 = sadd.s32 %s348, %s26
          %s350 = smul.addr %s349, 128
          %s351 = scalar_lea.hbm %s3, %s350
          %s353 = sshll.u32 %s341, 4
          %s354 = int_to_ptr.vmem [resolvable:$true] %s353
          %356 = dma.vmem_to_hbm [thread:$0]  %s354, 128, %s351, %s338
        $region40: #{tpu_custom_call.1} parent=31 // pred_fallthru
          _
      $region32: #{tpu_custom_call.1} parent=5 // pred_fallthru
        _
      %p357 = scmp.le.s32.totalorder 2, %s15
      // Predicated region
      $region41: #{tpu_custom_call.1} parent=5 // pred_check
        %p358 = pneg %p357
      $region42: #{tpu_custom_call.1} parent=5 // pred_check_branch
        %360 = sbr.rel (%p358) target = $region44
      $region43: #{tpu_custom_call.1} parent=5 // pred_region
        %s361 = ssub.s32 %s15, 2
        // Predicated region
        $region45: #{tpu_custom_call.1} parent=43 // pred_check
          %p362 = pneg %p146
        $region46: #{tpu_custom_call.1} parent=43 // pred_check_branch
          %364 = sbr.rel (%p362) target = $region48
        $region47: #{tpu_custom_call.1} parent=43 // pred_region
          %s365 = sand.u32 %s131, 1
          %s366 = scalar_lea.sflag [#allocation4], %s365
          %s367 = sand.u32 %s131, 1
          %s368 = smul.addr %s367, 8
          %s369 = scalar_lea.vmem [#allocation5], %s368
          %370 = dma.done %s366, 128
        $region48: #{tpu_custom_call.1} parent=43 // pred_fallthru
          _
      $region44: #{tpu_custom_call.1} parent=5 // pred_fallthru
        _
    $region6: #{tpu_custom_call.1} parent=1 // loop_footer
      %s19 = sadd.s32 1, %s15
    $region7: #{tpu_custom_call.1} parent=1 // loop_footer_branch
      %14 = sbr.rel target = $region3
    $region8: #{tpu_custom_call.1} parent=1 // loop_exit
      _
    %371 = vsyncpa [#allocation3], 1
    %s372 = scalar_lea.sflag [#allocation3], 1
    %373 = vsyncpa %s372, 1
    %374 = vsyncpa [#allocation4], 1
    %s375 = scalar_lea.sflag [#allocation4], 1
    %376 = vsyncpa %s375, 1

</llo_original>
